<compile_context>
chip_gen: v5e
topology: v5e:2x2
jax: 0.10.0
libtpu: 0.0.40
codegen_flags: <defaults>
</compile_context>

<pallas_src>
import jax
import jax.numpy as jnp
from jax.experimental import pallas as pl
from jax.experimental.pallas import tpu as pltpu

EPS = 1e-5  # PyTorch LayerNorm default


def conv_ln_kernel(p_ref, w_ref, b_ref, g_ref, bt_ref, o_ref):
    # p_ref : (TB, K, HWo)   transposed im2col patches for TB samples
    # w_ref : (Cout, K)      conv weight, flattened (c_in, kh, kw) -> K
    # b_ref : (Cout, 1)      conv bias
    # g_ref : (Cout, HWo)    LayerNorm gamma (channel-major, matches output layout)
    # bt_ref: (Cout, HWo)    LayerNorm beta
    # o_ref : (TB, Cout, HWo)
    tb, cout, hwo = o_ref.shape
    inv_n = 1.0 / float(cout * hwo)

    w = w_ref[...]
    g = g_ref[...]
    bt = bt_ref[...]
    # Hoisted: lane-broadcast the bias once per grid step, not once per sample
    # (JAX does not CSE broadcast_in_dim inside the loop body).
    b_full = jnp.broadcast_to(b_ref[...], (cout, hwo))

    # Per-sample loop: one lane-dense (Cout,K)x(K,HWo) MXU matmul plus a fused
    # per-sample LayerNorm (reduction over all C,H,W).  fori_loop (not a static
    # Python loop) so vreg live ranges stay bounded at large TB.
    def body(i, carry):
        y = jnp.dot(w, p_ref[i], preferred_element_type=jnp.float32) + b_full
        s = jnp.sum(y)
        ss = jnp.sum(y * y)
        mean = s * inv_n
        var = ss * inv_n - mean * mean
        inv = jax.lax.rsqrt(var + EPS)
        o_ref[i] = (y - mean) * (inv * g) + bt
        return carry

    jax.lax.fori_loop(0, tb, body, None, unroll=min(4, tb))


def lnt_forward(x, conv_w, conv_b, gamma, beta, *, tb=32, patch_dtype=jnp.float32):
    """x: [N, Cin, H, W] f32; conv_w: [Cout, Cin, 3, 3]; conv_b: [Cout];
    gamma/beta: [Cout, H-2, W-2]. Returns [N, Cout, H-2, W-2] f32.

    tb: batch tile per grid step (sweep 32..64).  patch_dtype=jnp.bfloat16 halves
    patch HBM traffic at ~5e-3 max-abs accuracy cost (default keeps f32)."""
    N, Cin, H, W = x.shape
    Cout, _, KH, KW = conv_w.shape
    Ho, Wo = H - KH + 1, W - KW + 1
    HWo = Ho * Wo
    K = Cin * KH * KW

    x = x.astype(jnp.float32)

    # --- im2col, directly in transposed (N, K, HWo) layout (XLA-side glue) ---
    # TODO(synk): fuse im2col into the kernel to avoid this patch HBM round-trip.
    taps = [x[:, :, kh:kh + Ho, kw:kw + Wo] for kh in range(KH) for kw in range(KW)]
    p = jnp.stack(taps, axis=2).reshape(N, K, HWo).astype(patch_dtype)

    w2 = conv_w.reshape(Cout, K).astype(patch_dtype)     # same dtype as patches for the MXU
    b2 = conv_b.reshape(Cout, 1).astype(jnp.float32)
    g2 = gamma.reshape(Cout, HWo).astype(jnp.float32)    # trivial contiguous reshape
    bt2 = beta.reshape(Cout, HWo).astype(jnp.float32)

    # Batch tile: large enough to amortize per-grid-step pipeline overhead, but keep
    # >= 2 grid steps so the "parallel" grid axis can shard across v7x's 2 TensorCores.
    tb = max(1, min(tb, N))
    if N >= 2:
        tb = min(tb, (N + 1) // 2)
    n_pad = ((N + tb - 1) // tb) * tb
    if n_pad != N:
        p = jnp.pad(p, ((0, n_pad - N), (0, 0), (0, 0)))   # padded rows discarded below

    out = pl.pallas_call(
        conv_ln_kernel,
        out_shape=jax.ShapeDtypeStruct((n_pad, Cout, HWo), jnp.float32),
        grid_spec=pltpu.PrefetchScalarGridSpec(
            num_scalar_prefetch=0,
            grid=(n_pad // tb,),
            in_specs=[
                pl.BlockSpec((tb, K, HWo), lambda i: (i, 0, 0)),
                pl.BlockSpec((Cout, K), lambda i: (0, 0)),
                pl.BlockSpec((Cout, 1), lambda i: (0, 0)),
                pl.BlockSpec((Cout, HWo), lambda i: (0, 0)),
                pl.BlockSpec((Cout, HWo), lambda i: (0, 0)),
            ],
            out_specs=pl.BlockSpec((tb, Cout, HWo), lambda i: (i, 0, 0)),
        ),
        compiler_params=pltpu.CompilerParams(dimension_semantics=("parallel",)),
    )(p, w2, b2, g2, bt2)

    # (N, Cout, HWo) is NCHW flattened: the final reshape is contiguous (no transpose).
    return out[:N].reshape(N, Cout, Ho, Wo)


def _reference(x, conv_w, conv_b, gamma, beta):
    y = jax.lax.conv_general_dilated(
        x, conv_w, window_strides=(1, 1), padding="VALID",
        dimension_numbers=("NCHW", "OIHW", "NCHW"))
    y = y + conv_b.reshape(1, -1, 1, 1)
    mean = jnp.mean(y, axis=(1, 2, 3), keepdims=True)
    var = jnp.mean((y - mean) ** 2, axis=(1, 2, 3), keepdims=True)
    return (y - mean) * jax.lax.rsqrt(var + EPS) * gamma[None] + beta[None]


if __name__ == "__main__":
    N, colors, H, W = 2, 4, 16, 16
    feats = 64  # fixed by LayerNorm((64, 14, 14))

    k0, k1, k2, k3, k4 = jax.random.split(jax.random.PRNGKey(0), 5)
    x = jax.random.normal(k0, (N, colors, H, W), dtype=jnp.float32)
    conv_w = 0.1 * jax.random.normal(k1, (feats, colors, 3, 3), dtype=jnp.float32)
    conv_b = 0.1 * jax.random.normal(k2, (feats,), dtype=jnp.float32)
    gamma = 1.0 + 0.05 * jax.random.normal(k3, (feats, 14, 14), dtype=jnp.float32)
    beta = 0.05 * jax.random.normal(k4, (feats, 14, 14), dtype=jnp.float32)

    out = lnt_forward(x, conv_w, conv_b, gamma, beta)
    out = jax.block_until_ready(out)

    ref = _reference(x, conv_w, conv_b, gamma, beta)
    assert out.shape == (N, feats, 14, 14)
    assert jnp.max(jnp.abs(out - ref)) < 2e-3, "mismatch vs reference"

    print("KERNEL_OK")
</pallas_src>

<mosaic_0001>
module attributes {stable_mosaic.version = 11 : i64} {
  func.func @conv_ln_kernel(%arg0: i32, %arg1: memref<1x36x196xf32, #tpu.memory_space<vmem>>, %arg2: memref<64x36xf32, #tpu.memory_space<vmem>>, %arg3: memref<64x1xf32, #tpu.memory_space<vmem>>, %arg4: memref<64x196xf32, #tpu.memory_space<vmem>>, %arg5: memref<64x196xf32, #tpu.memory_space<vmem>>, %arg6: memref<1x64x196xf32, #tpu.memory_space<vmem>>) attributes {dimension_semantics = [#tpu.dimension_semantics<parallel>], iteration_bounds = array<i64: 2>, scalar_prefetch = 0 : i64, scratch_operands = 0 : i64, tpu.core_type = #tpu.core_type<tc>, window_params = [{transform_indices = @transform_0, window_bounds = array<i64: 1, 36, 196>}, {pipeline_mode = #tpu.pipeline_mode<synchronous>, transform_indices = @transform_1, window_bounds = array<i64: 64, 36>}, {pipeline_mode = #tpu.pipeline_mode<synchronous>, transform_indices = @transform_2, window_bounds = array<i64: 64, 1>}, {pipeline_mode = #tpu.pipeline_mode<synchronous>, transform_indices = @transform_3, window_bounds = array<i64: 64, 196>}, {pipeline_mode = #tpu.pipeline_mode<synchronous>, transform_indices = @transform_4, window_bounds = array<i64: 64, 196>}, {transform_indices = @transform_5, window_bounds = array<i64: 1, 64, 196>}]} {
    %c0 = arith.constant 0 : index
    %c0_0 = arith.constant 0 : index
    %0 = vector.load %arg2[%c0, %c0_0] : memref<64x36xf32, #tpu.memory_space<vmem>>, vector<64x36xf32>
    %c0_1 = arith.constant 0 : index
    %c0_2 = arith.constant 0 : index
    %1 = vector.load %arg4[%c0_1, %c0_2] : memref<64x196xf32, #tpu.memory_space<vmem>>, vector<64x196xf32>
    %c0_3 = arith.constant 0 : index
    %c0_4 = arith.constant 0 : index
    %2 = vector.load %arg5[%c0_3, %c0_4] : memref<64x196xf32, #tpu.memory_space<vmem>>, vector<64x196xf32>
    %c0_5 = arith.constant 0 : index
    %c0_6 = arith.constant 0 : index
    %3 = vector.load %arg3[%c0_5, %c0_6] : memref<64x1xf32, #tpu.memory_space<vmem>>, vector<64x1xf32>
    %4 = vector.shape_cast %3 : vector<64x1xf32> to vector<64x1xf32>
    %5 = vector.broadcast %4 : vector<64x1xf32> to vector<64x196xf32>
    %c0_i32 = arith.constant 0 : i32
    %6 = arith.index_cast %c0_i32 : i32 to index
    %c0_7 = arith.constant 0 : index
    %c0_8 = arith.constant 0 : index
    %7 = vector.load %arg1[%6, %c0_7, %c0_8] : memref<1x36x196xf32, #tpu.memory_space<vmem>>, vector<1x36x196xf32>
    %8 = vector.shape_cast %7 : vector<1x36x196xf32> to vector<36x196xf32>
    %cst = arith.constant dense<0.000000e+00> : vector<64x196xf32>
    %9 = tpu.matmul %0, %8, %cst {dimension_numbers = #tpu.dot_dimension_numbers<[1], [0], [0], [1], [0, 0, 1, 1], [], []>} : vector<64x36xf32>, vector<36x196xf32>, vector<64x196xf32> -> vector<64x196xf32>
    %10 = arith.addf %9, %5 : vector<64x196xf32>
    %11 = vector.shape_cast %10 : vector<64x196xf32> to vector<1x64x196xf32>
    %cst_9 = arith.constant dense<0.000000e+00> : vector<1xf32>
    %12 = vector.multi_reduction <add>, %11, %cst_9 [1, 2] : vector<1x64x196xf32> to vector<1xf32>
    %13 = vector.shape_cast %12 : vector<1xf32> to vector<1x1x1xf32>
    %14 = vector.extract %13[0, 0, 0] : f32 from vector<1x1x1xf32>
    %15 = arith.mulf %10, %10 : vector<64x196xf32>
    %16 = vector.shape_cast %15 : vector<64x196xf32> to vector<1x64x196xf32>
    %cst_10 = arith.constant dense<0.000000e+00> : vector<1xf32>
    %17 = vector.multi_reduction <add>, %16, %cst_10 [1, 2] : vector<1x64x196xf32> to vector<1xf32>
    %18 = vector.shape_cast %17 : vector<1xf32> to vector<1x1x1xf32>
    %19 = vector.extract %18[0, 0, 0] : f32 from vector<1x1x1xf32>
    %cst_11 = arith.constant 7.97193861E-5 : f32
    %20 = arith.mulf %14, %cst_11 : f32
    %cst_12 = arith.constant 7.97193861E-5 : f32
    %21 = arith.mulf %19, %cst_12 : f32
    %22 = arith.mulf %20, %20 : f32
    %23 = arith.subf %21, %22 : f32
    %cst_13 = arith.constant 9.99999974E-6 : f32
    %24 = arith.addf %23, %cst_13 : f32
    %25 = math.rsqrt %24 : f32
    %26 = vector.broadcast %20 : f32 to vector<64x196xf32>
    %27 = arith.subf %10, %26 : vector<64x196xf32>
    %28 = vector.broadcast %25 : f32 to vector<64x196xf32>
    %29 = arith.mulf %28, %1 : vector<64x196xf32>
    %30 = arith.mulf %27, %29 : vector<64x196xf32>
    %31 = arith.addf %30, %2 : vector<64x196xf32>
    %32 = arith.index_cast %c0_i32 : i32 to index
    %c0_14 = arith.constant 0 : index
    %c0_15 = arith.constant 0 : index
    %33 = vector.load %arg6[%32, %c0_14, %c0_15] : memref<1x64x196xf32, #tpu.memory_space<vmem>>, vector<1x64x196xf32>
    %34 = vector.shape_cast %33 : vector<1x64x196xf32> to vector<64x196xf32>
    %35 = vector.shape_cast %31 : vector<64x196xf32> to vector<1x64x196xf32>
    tpu.vector_store %arg6[%32, %c0_14, %c0_15], %35 {strides = array<i32>} : memref<1x64x196xf32, #tpu.memory_space<vmem>>, vector<1x64x196xf32>,
    %c1_i32 = arith.constant 1 : i32
    return
  }
  func.func @transform_0(%arg0: i32) -> (i32, i32, i32) {
    %c0_i32 = arith.constant 0 : i32
    %c0_i32_0 = arith.constant 0 : i32
    %c0_i32_1 = arith.constant 0 : i32
    return %arg0, %c0_i32, %c0_i32_0 : i32, i32, i32
  }
  func.func @transform_1(%arg0: i32) -> (i32, i32) {
    %c0_i32 = arith.constant 0 : i32
    %c0_i32_0 = arith.constant 0 : i32
    %c0_i32_1 = arith.constant 0 : i32
    return %c0_i32, %c0_i32_0 : i32, i32
  }
  func.func @transform_2(%arg0: i32) -> (i32, i32) {
    %c0_i32 = arith.constant 0 : i32
    %c0_i32_0 = arith.constant 0 : i32
    %c0_i32_1 = arith.constant 0 : i32
    return %c0_i32, %c0_i32_0 : i32, i32
  }
  func.func @transform_3(%arg0: i32) -> (i32, i32) {
    %c0_i32 = arith.constant 0 : i32
    %c0_i32_0 = arith.constant 0 : i32
    %c0_i32_1 = arith.constant 0 : i32
    return %c0_i32, %c0_i32_0 : i32, i32
  }
  func.func @transform_4(%arg0: i32) -> (i32, i32) {
    %c0_i32 = arith.constant 0 : i32
    %c0_i32_0 = arith.constant 0 : i32
    %c0_i32_1 = arith.constant 0 : i32
    return %c0_i32, %c0_i32_0 : i32, i32
  }
  func.func @transform_5(%arg0: i32) -> (i32, i32, i32) {
    %c0_i32 = arith.constant 0 : i32
    %c0_i32_0 = arith.constant 0 : i32
    %c0_i32_1 = arith.constant 0 : i32
    return %arg0, %c0_i32, %c0_i32_0 : i32, i32, i32
  }
}

</mosaic_0001>

<llo_original>
// kernel: tpu_custom_call.1
$region0: #{tpu_custom_call.1}
  #allocation0 [shape = 'u32[]', space=smem, size = 0x4, offset = 0x4, fixed_abs, tag = 'smem constant byte address 0x4 - core index']
  #allocation1 [shape = 'u32[72,128]{1,0:T(1,128)}', space=vmem, size = 0x9000, scoped, tag = 'internal scratch']
  %s0 = inlined_call_operand.vmem [shape: f32[2,36,196], index: 0, kind: input, shape index: {}]
  %s1 = inlined_call_operand.vmem [shape: f32[64,36], index: 1, kind: input, shape index: {}]
  %s2 = inlined_call_operand.vmem [shape: f32[64,1], index: 2, kind: input, shape index: {}]
  %s3 = inlined_call_operand.vmem [shape: f32[64,196], index: 3, kind: input, shape index: {}]
  %s4 = inlined_call_operand.vmem [shape: f32[64,196], index: 4, kind: input, shape index: {}]
  %s5 = inlined_call_operand.hbm [shape: f32[2,64,196], index: 5, kind: output, shape index: {}]
  %s6 = sld [smem:[#allocation0]]
  $region53: #{tpu_custom_call.1} parent=0
    _
  %s8 = ssub.s32 1, %s6
  %s9 = scalar_select 0, %s8, %s6
  $region1: #{tpu_custom_call.1} parent=0
    #allocation2 [shape = 'u8[131072]{0}', space=vmem, size = 0x20000, scoped, tag = 'output window, operand 0']
    #allocation3 [shape = 's32[2]{0}', space=sflag, size = 0x8, scoped, tag = 'scoped memory for tpu_custom_call.1']
    %10 = vsyncpa [#allocation3], 0
    %s11 = scalar_lea.sflag [#allocation3], 1
    %12 = vsyncpa %s11, 0
    loop: start=0, step=1, limit=4
    $region2: #{tpu_custom_call.1} parent=1 // loop_pre_header
      _
    $region3: #{tpu_custom_call.1} parent=1 // loop_header
      %s14 = sphi 0, %s18
      %p15 = scmp.ge.s32.totalorder %s14, 4
      %s24 = sphi 0, %s26
      %s27 = sphi 0, %s24
      %s28 = sphi 0, %s27
      %s44 = sphi 0, %s28
      %s48 = sphi 0, %s48
      %s50 = sphi 0, %s48
      %s51 = sphi 0, %s50
      %s65 = sphi 0, %s51
      %s69 = sphi 0, %s69
      %s71 = sphi 0, %s69
      %s72 = sphi 0, %s71
      %s86 = sphi 0, %s72
      %s90 = sphi 0, %s90
      %s92 = sphi 0, %s90
      %s93 = sphi 0, %s92
      %s107 = sphi 0, %s93
      %s111 = sphi 0, %s111
      %s113 = sphi 0, %s111
      %s114 = sphi 0, %s113
      %s128 = sphi 0, %s114
      %s134 = sphi 0, %s136
      %s137 = sphi 0, %s134
      %s138 = sphi 0, %s137
      %s154 = sphi 0, %s138
    $region4: #{tpu_custom_call.1} parent=1 // loop_header_branch
      %17 = sbr.rel (%p15) target = $region8
    $region5: #{tpu_custom_call.1} parent=1 // loop_body
      %s19 = ssub.s32 %s14, 1
      %s20 = ssub.s32 %s14, 2
      %s21 = sadd.s32 %s14, 1
      %s22 = ssub.s32 %s14, %s21
      %p23 = scmp.eq.s32.totalorder %s22, 0
      %s25 = sadd.s32 %s24, 1
      %s26 = scalar_select %p23, %s24, %s25
      %p29 = pneg %p23
      %p30 = scmp.eq.s32.totalorder %s14, 1
      %p31 = por %p29, %p30
      %p32 = scmp.ne.s32.totalorder %s24, %s27
      %p33 = scmp.eq.s32.totalorder %s14, 0
      %p34 = por %p32, %p33
      %p35 = scmp.ne.s32.totalorder %s24, %s27
      %p36 = scmp.eq.s32.totalorder %s19, 1
      %p37 = por %p35, %p36
      %p38 = scmp.ne.s32.totalorder %s27, %s28
      %p39 = scmp.eq.s32.totalorder %s19, 0
      %p40 = por %p38, %p39
      %p41 = scmp.ne.s32.totalorder %s27, %s28
      %p42 = scmp.eq.s32.totalorder %s20, 1
      %p43 = por %p41, %p42
      %p45 = scmp.ne.s32.totalorder %s28, %s44
      %p46 = scmp.eq.s32.totalorder %s20, 0
      %p47 = por %p45, %p46
      %s49 = sadd.s32 %s48, 1
      %p52 = scmp.eq.s32.totalorder %s14, 1
      %p53 = scmp.ne.s32.totalorder %s48, %s50
      %p54 = scmp.eq.s32.totalorder %s14, 0
      %p55 = por %p53, %p54
      %p56 = scmp.ne.s32.totalorder %s48, %s50
      %p57 = scmp.eq.s32.totalorder %s19, 1
      %p58 = por %p56, %p57
      %p59 = scmp.ne.s32.totalorder %s50, %s51
      %p60 = scmp.eq.s32.totalorder %s19, 0
      %p61 = por %p59, %p60
      %p62 = scmp.ne.s32.totalorder %s50, %s51
      %p63 = scmp.eq.s32.totalorder %s20, 1
      %p64 = por %p62, %p63
      %p66 = scmp.ne.s32.totalorder %s51, %s65
      %p67 = scmp.eq.s32.totalorder %s20, 0
      %p68 = por %p66, %p67
      %s70 = sadd.s32 %s69, 1
      %p73 = scmp.eq.s32.totalorder %s14, 1
      %p74 = scmp.ne.s32.totalorder %s69, %s71
      %p75 = scmp.eq.s32.totalorder %s14, 0
      %p76 = por %p74, %p75
      %p77 = scmp.ne.s32.totalorder %s69, %s71
      %p78 = scmp.eq.s32.totalorder %s19, 1
      %p79 = por %p77, %p78
      %p80 = scmp.ne.s32.totalorder %s71, %s72
      %p81 = scmp.eq.s32.totalorder %s19, 0
      %p82 = por %p80, %p81
      %p83 = scmp.ne.s32.totalorder %s71, %s72
      %p84 = scmp.eq.s32.totalorder %s20, 1
      %p85 = por %p83, %p84
      %p87 = scmp.ne.s32.totalorder %s72, %s86
      %p88 = scmp.eq.s32.totalorder %s20, 0
      %p89 = por %p87, %p88
      %s91 = sadd.s32 %s90, 1
      %p94 = scmp.eq.s32.totalorder %s14, 1
      %p95 = scmp.ne.s32.totalorder %s90, %s92
      %p96 = scmp.eq.s32.totalorder %s14, 0
      %p97 = por %p95, %p96
      %p98 = scmp.ne.s32.totalorder %s90, %s92
      %p99 = scmp.eq.s32.totalorder %s19, 1
      %p100 = por %p98, %p99
      %p101 = scmp.ne.s32.totalorder %s92, %s93
      %p102 = scmp.eq.s32.totalorder %s19, 0
      %p103 = por %p101, %p102
      %p104 = scmp.ne.s32.totalorder %s92, %s93
      %p105 = scmp.eq.s32.totalorder %s20, 1
      %p106 = por %p104, %p105
      %p108 = scmp.ne.s32.totalorder %s93, %s107
      %p109 = scmp.eq.s32.totalorder %s20, 0
      %p110 = por %p108, %p109
      %s112 = sadd.s32 %s111, 1
      %p115 = scmp.eq.s32.totalorder %s14, 1
      %p116 = scmp.ne.s32.totalorder %s111, %s113
      %p117 = scmp.eq.s32.totalorder %s14, 0
      %p118 = por %p116, %p117
      %p119 = scmp.ne.s32.totalorder %s111, %s113
      %p120 = scmp.eq.s32.totalorder %s19, 1
      %p121 = por %p119, %p120
      %p122 = scmp.ne.s32.totalorder %s113, %s114
      %p123 = scmp.eq.s32.totalorder %s19, 0
      %p124 = por %p122, %p123
      %p125 = scmp.ne.s32.totalorder %s113, %s114
      %p126 = scmp.eq.s32.totalorder %s20, 1
      %p127 = por %p125, %p126
      %p129 = scmp.ne.s32.totalorder %s114, %s128
      %p130 = scmp.eq.s32.totalorder %s20, 0
      %p131 = por %p129, %p130
      %s132 = ssub.s32 %s14, %s21
      %p133 = scmp.eq.s32.totalorder %s132, 0
      %s135 = sadd.s32 %s134, 1
      %s136 = scalar_select %p133, %s134, %s135
      %p139 = pneg %p133
      %p140 = scmp.eq.s32.totalorder %s14, 1
      %p141 = por %p139, %p140
      %p142 = scmp.ne.s32.totalorder %s134, %s137
      %p143 = scmp.eq.s32.totalorder %s14, 0
      %p144 = por %p142, %p143
      %p145 = scmp.ne.s32.totalorder %s134, %s137
      %p146 = scmp.eq.s32.totalorder %s19, 1
      %p147 = por %p145, %p146
      %p148 = scmp.ne.s32.totalorder %s137, %s138
      %p149 = scmp.eq.s32.totalorder %s19, 0
      %p150 = por %p148, %p149
      %p151 = scmp.ne.s32.totalorder %s137, %s138
      %p152 = scmp.eq.s32.totalorder %s20, 1
      %p153 = por %p151, %p152
      %p155 = scmp.ne.s32.totalorder %s138, %s154
      %p156 = scmp.eq.s32.totalorder %s20, 0
      %p157 = por %p155, %p156
      %p158 = scmp.le.s32.totalorder 1, %s14
      %p159 = scmp.lt.s32.totalorder %s14, 3
      %p160 = pnand %p158, %p159
      %p161 = pneg %p160
      // Predicated region
      $region9: #{tpu_custom_call.1} parent=5 // pred_check
        _
      $region10: #{tpu_custom_call.1} parent=5 // pred_check_branch
        %163 = sbr.rel (%p160) target = $region12
      $region11: #{tpu_custom_call.1} parent=5 // pred_region
        %s164 = ssub.s32 %s14, 1
        // Predicated region
        $region13: #{tpu_custom_call.1} parent=11 // pred_check
          %p165 = pneg %p61
        $region14: #{tpu_custom_call.1} parent=11 // pred_check_branch
          %167 = sbr.rel (%p165) target = $region16
        $region15: #{tpu_custom_call.1} parent=11 // pred_region
          _
        $region16: #{tpu_custom_call.1} parent=11 // pred_fallthru
          _
        // Predicated region
        $region17: #{tpu_custom_call.1} parent=11 // pred_check
          %p168 = pneg %p82
        $region18: #{tpu_custom_call.1} parent=11 // pred_check_branch
          %170 = sbr.rel (%p168) target = $region20
        $region19: #{tpu_custom_call.1} parent=11 // pred_region
          _
        $region20: #{tpu_custom_call.1} parent=11 // pred_fallthru
          _
        // Predicated region
        $region21: #{tpu_custom_call.1} parent=11 // pred_check
          %p171 = pneg %p103
        $region22: #{tpu_custom_call.1} parent=11 // pred_check_branch
          %173 = sbr.rel (%p171) target = $region24
        $region23: #{tpu_custom_call.1} parent=11 // pred_region
          _
        $region24: #{tpu_custom_call.1} parent=11 // pred_fallthru
          _
        // Predicated region
        $region25: #{tpu_custom_call.1} parent=11 // pred_check
          %p174 = pneg %p124
        $region26: #{tpu_custom_call.1} parent=11 // pred_check_branch
          %176 = sbr.rel (%p174) target = $region28
        $region27: #{tpu_custom_call.1} parent=11 // pred_region
          _
        $region28: #{tpu_custom_call.1} parent=11 // pred_fallthru
          _
      $region12: #{tpu_custom_call.1} parent=5 // pred_fallthru
        _
      %p177 = scmp.lt.s32.totalorder %s14, 2
      // Predicated region
      $region29: #{tpu_custom_call.1} parent=5 // pred_check
        %p178 = pneg %p177
      $region30: #{tpu_custom_call.1} parent=5 // pred_check_branch
        %180 = sbr.rel (%p178) target = $region32
      $region31: #{tpu_custom_call.1} parent=5 // pred_region
        // Predicated region
        $region33: #{tpu_custom_call.1} parent=31 // pred_check
          %p181 = pneg %p34
        $region34: #{tpu_custom_call.1} parent=31 // pred_check_branch
          %183 = sbr.rel (%p181) target = $region36
        $region35: #{tpu_custom_call.1} parent=31 // pred_region
          %p184 = scmp.lt.s32.totalorder %s14, 1
          %s185 = scalar_select %p184, %s14, 1
          %s186 = smul.addr %s185, 10
          %s187 = smul.addr %s186, 8
          %s188 = scalar_lea.vmem %s0, %s187
        $region36: #{tpu_custom_call.1} parent=31 // pred_fallthru
          _
      $region32: #{tpu_custom_call.1} parent=5 // pred_fallthru
        _
      %p189 = scmp.le.s32.totalorder 1, %s14
      %p190 = scmp.lt.s32.totalorder %s14, 3
      %p191 = pnand %p189, %p190
      %p192 = pneg %p191
      // Predicated region
      $region37: #{tpu_custom_call.1} parent=5 // pred_check
        _
      $region38: #{tpu_custom_call.1} parent=5 // pred_check_branch
        %194 = sbr.rel (%p191) target = $region40
      $region39: #{tpu_custom_call.1} parent=5 // pred_region
        %s195 = ssub.s32 %s14, 1
        %p196 = scmp.lt.s32.totalorder %s19, 1
        %s197 = scalar_select %p196, %s19, 1
        %s198 = smul.addr %s197, 10
        %s199 = smul.addr %s198, 8
        %s200 = scalar_lea.vmem %s0, %s199
        %p201 = pneg %p40
        %p202 = pneg %p37
        %p203 = pneg %p61
        %p204 = pneg %p58
        %p205 = pneg %p82
        %p206 = pneg %p79
        %p207 = pneg %p103
        %p208 = pneg %p100
        %p209 = pneg %p124
        %p210 = pneg %p121
        %p211 = pneg %p150
        %p212 = pneg %p147
        %s213 = sand.u32 %s137, 1
        %s214 = scalar_lea.sflag [#allocation3], %s213
        %s215 = sand.u32 %s137, 1
        %s216 = smul.addr %s215, 128
        %s217 = scalar_lea.vmem [#allocation2], %s216
        %p218 = scmp.lt.s32.totalorder %s19, 1
        %s219 = scalar_select %p218, %s19, 1
        %s220 = smul.addr %s219, 10
        %s221 = smul.addr %s220, 8
        %s222 = scalar_lea.vmem %s0, %s221
        %v223 = vld [vmem:[%s1] sm:$0xff]
        %v224 = vld [vmem:[%s1 + $0x8] sm:$0xff]
        %v225 = vld [vmem:[%s1 + $0x10] sm:$0xff]
        %v226 = vld [vmem:[%s1 + $0x18] sm:$0xff]
        %v227 = vld [vmem:[%s1 + $0x20] sm:$0xff]
        %v228 = vld [vmem:[%s1 + $0x28] sm:$0xff]
        %v229 = vld [vmem:[%s1 + $0x30] sm:$0xff]
        %v230 = vld [vmem:[%s1 + $0x38] sm:$0xff]
        %v231 = vld [vmem:[%s3] sm:$0xff]
        %v232 = vld [vmem:[%s3 + $0x8] sm:$0xff]
        %v233 = vld [vmem:[%s3 + $0x10] sm:$0xff]
        %v234 = vld [vmem:[%s3 + $0x18] sm:$0xff]
        %v235 = vld [vmem:[%s3 + $0x20] sm:$0xff]
        %v236 = vld [vmem:[%s3 + $0x28] sm:$0xff]
        %v237 = vld [vmem:[%s3 + $0x30] sm:$0xff]
        %v238 = vld [vmem:[%s3 + $0x38] sm:$0xff]
        %v239 = vld [vmem:[%s3 + $0x40] sm:$0xff]
        %v240 = vld [vmem:[%s3 + $0x48] sm:$0xff]
        %v241 = vld [vmem:[%s3 + $0x50] sm:$0xff]
        %v242 = vld [vmem:[%s3 + $0x58] sm:$0xff]
        %v243 = vld [vmem:[%s3 + $0x60] sm:$0xff]
        %v244 = vld [vmem:[%s3 + $0x68] sm:$0xff]
        %v245 = vld [vmem:[%s3 + $0x70] sm:$0xff]
        %v246 = vld [vmem:[%s3 + $0x78] sm:$0xff]
        %v247 = vld [vmem:[%s4] sm:$0xff]
        %v248 = vld [vmem:[%s4 + $0x8] sm:$0xff]
        %v249 = vld [vmem:[%s4 + $0x10] sm:$0xff]
        %v250 = vld [vmem:[%s4 + $0x18] sm:$0xff]
        %v251 = vld [vmem:[%s4 + $0x20] sm:$0xff]
        %v252 = vld [vmem:[%s4 + $0x28] sm:$0xff]
        %v253 = vld [vmem:[%s4 + $0x30] sm:$0xff]
        %v254 = vld [vmem:[%s4 + $0x38] sm:$0xff]
        %v255 = vld [vmem:[%s4 + $0x40] sm:$0xff]
        %v256 = vld [vmem:[%s4 + $0x48] sm:$0xff]
        %v257 = vld [vmem:[%s4 + $0x50] sm:$0xff]
        %v258 = vld [vmem:[%s4 + $0x58] sm:$0xff]
        %v259 = vld [vmem:[%s4 + $0x60] sm:$0xff]
        %v260 = vld [vmem:[%s4 + $0x68] sm:$0xff]
        %v261 = vld [vmem:[%s4 + $0x70] sm:$0xff]
        %v262 = vld [vmem:[%s4 + $0x78] sm:$0xff]
        %v263 = vld [vmem:[%s2] sm:$0xff]
        %v264 = vld [vmem:[%s2 + $0x8] sm:$0xff]
        %v265 = vld [vmem:[%s2 + $0x10] sm:$0xff]
        %v266 = vld [vmem:[%s2 + $0x18] sm:$0xff]
        %v267 = vld [vmem:[%s2 + $0x20] sm:$0xff]
        %v268 = vld [vmem:[%s2 + $0x28] sm:$0xff]
        %v269 = vld [vmem:[%s2 + $0x30] sm:$0xff]
        %v270 = vld [vmem:[%s2 + $0x38] sm:$0xff]
        %272 = vset.pattern.permute.xlu0 0
        %273 = vperm.xlu0 %272, %v263
        %v274 = vpop.permute.xlu0 %273
        %277 = vset.pattern.permute.xlu0 0
        %278 = vperm.xlu0 %277, %v264
        %v279 = vpop.permute.xlu0 %278
        %282 = vset.pattern.permute.xlu0 0
        %283 = vperm.xlu0 %282, %v265
        %v284 = vpop.permute.xlu0 %283
        %287 = vset.pattern.permute.xlu0 0
        %288 = vperm.xlu0 %287, %v266
        %v289 = vpop.permute.xlu0 %288
        %292 = vset.pattern.permute.xlu0 0
        %293 = vperm.xlu0 %292, %v267
        %v294 = vpop.permute.xlu0 %293
        %297 = vset.pattern.permute.xlu0 0
        %298 = vperm.xlu0 %297, %v268
        %v299 = vpop.permute.xlu0 %298
        %302 = vset.pattern.permute.xlu0 0
        %303 = vperm.xlu0 %302, %v269
        %v304 = vpop.permute.xlu0 %303
        %307 = vset.pattern.permute.xlu0 0
        %308 = vperm.xlu0 %307, %v270
        %v309 = vpop.permute.xlu0 %308
        %v311 = vld [vmem:[%s222] sm:$0xff]
        %v312 = vld [vmem:[%s222 + $0x8] sm:$0xff]
        %v313 = vld [vmem:[%s222 + $0x10] sm:$0xff]
        %v314 = vld [vmem:[%s222 + $0x18] sm:$0xff]
        %v315 = vld [vmem:[%s222 + $0x20] sm:$0xff]
        %v316 = vld [vmem:[%s222 + $0x28] sm:$0xff]
        %v317 = vld [vmem:[%s222 + $0x30] sm:$0xff]
        %v318 = vld [vmem:[%s222 + $0x38] sm:$0xff]
        %v319 = vld [vmem:[%s222 + $0x40] sm:$0xf]
        %v320 = vld [vmem:[%s222 + $0x48] sm:$0xf]
        %vm321 = vcmask 293888
        %v323 = vsel %vm321, %v223, 0
        %v326 = vsel %vm321, %v224, 0
        %v329 = vsel %vm321, %v225, 0
        %v332 = vsel %vm321, %v226, 0
        %v335 = vsel %vm321, %v227, 0
        %v338 = vsel %vm321, %v228, 0
        %v341 = vsel %vm321, %v229, 0
        %v344 = vsel %vm321, %v230, 0
        %vm346 = vcmask 1043456
        %v348 = vsel %vm346, %v319, 0
        %v351 = vsel %vm346, %v320, 0
        %353 = vmatpush.msra.mxu0 0.0
        %354 = vmatpush.msra.mxu0 0.0
        %355 = vmatpush.msra.mxu0 0.0
        %356 = vmatpush.msra.mxu0 0.0
        %357 = vmatpush.msra.mxu0 0.0
        %358 = vmatpush.msra.mxu0 0.0
        %359 = vmatpush.msra.mxu0 0.0
        %360 = vmatpush.msra.mxu0 0.0
        %361 = vmatpush.msra.mxu0 0.0
        %362 = vmatpush.msra.mxu0 0.0
        %363 = vmatpush.msra.mxu0 0.0
        %364 = vmatpush.msra.mxu0 %v348
        %365 = vmatpush.msra.mxu0 %v317
        %366 = vmatpush.msra.mxu0 %v315
        %367 = vmatpush.msra.mxu0 %v313
        %368 = vmatpush.msra.mxu0 %v311
        %369 = vmatmul.f32.gmra.mxu0 %v323
        %v370 = vpop.f32.mrf.mxu0
        %v371 = vadd.f32 %v274, %v370
        %372 = vmatmul.f32.gmra.mxu0 %v326
        %v373 = vpop.f32.mrf.mxu0
        %v374 = vadd.f32 %v279, %v373
        %375 = vmatmul.f32.gmra.mxu0 %v329
        %v376 = vpop.f32.mrf.mxu0
        %v377 = vadd.f32 %v284, %v376
        %378 = vmatmul.f32.gmra.mxu0 %v332
        %v379 = vpop.f32.mrf.mxu0
        %v380 = vadd.f32 %v289, %v379
        %381 = vmatmul.f32.gmra.mxu0 %v335
        %v382 = vpop.f32.mrf.mxu0
        %v383 = vadd.f32 %v294, %v382
        %384 = vmatmul.f32.gmra.mxu0 %v338
        %v385 = vpop.f32.mrf.mxu0
        %v386 = vadd.f32 %v299, %v385
        %387 = vmatmul.f32.gmra.mxu0 %v341
        %v388 = vpop.f32.mrf.mxu0
        %v389 = vadd.f32 %v304, %v388
        %390 = vmatmul.f32.gmra.mxu0 %v344
        %v391 = vpop.f32.mrf.mxu0
        %v392 = vadd.f32 %v309, %v391
        %393 = vdwg.mxu0
        %394 = vmatpush.msra.mxu0 0.0
        %395 = vmatpush.msra.mxu0 0.0
        %396 = vmatpush.msra.mxu0 0.0
        %397 = vmatpush.msra.mxu0 0.0
        %398 = vmatpush.msra.mxu0 0.0
        %399 = vmatpush.msra.mxu0 0.0
        %400 = vmatpush.msra.mxu0 0.0
        %401 = vmatpush.msra.mxu0 0.0
        %402 = vmatpush.msra.mxu0 0.0
        %403 = vmatpush.msra.mxu0 0.0
        %404 = vmatpush.msra.mxu0 0.0
        %405 = vmatpush.msra.mxu0 %v351
        %406 = vmatpush.msra.mxu0 %v318
        %407 = vmatpush.msra.mxu0 %v316
        %408 = vmatpush.msra.mxu0 %v314
        %409 = vmatpush.msra.mxu0 %v312
        %410 = vmatmul.f32.gmra.mxu0 %v323
        %v411 = vpop.f32.mrf.mxu0
        %v412 = vadd.f32 %v274, %v411
        %413 = vmatmul.f32.gmra.mxu0 %v326
        %v414 = vpop.f32.mrf.mxu0
        %v415 = vadd.f32 %v279, %v414
        %416 = vmatmul.f32.gmra.mxu0 %v329
        %v417 = vpop.f32.mrf.mxu0
        %v418 = vadd.f32 %v284, %v417
        %419 = vmatmul.f32.gmra.mxu0 %v332
        %v420 = vpop.f32.mrf.mxu0
        %v421 = vadd.f32 %v289, %v420
        %422 = vmatmul.f32.gmra.mxu0 %v335
        %v423 = vpop.f32.mrf.mxu0
        %v424 = vadd.f32 %v294, %v423
        %425 = vmatmul.f32.gmra.mxu0 %v338
        %v426 = vpop.f32.mrf.mxu0
        %v427 = vadd.f32 %v299, %v426
        %428 = vmatmul.f32.gmra.mxu0 %v341
        %v429 = vpop.f32.mrf.mxu0
        %v430 = vadd.f32 %v304, %v429
        %431 = vmatmul.f32.gmra.mxu0 %v344
        %v432 = vpop.f32.mrf.mxu0
        %v433 = vadd.f32 %v309, %v432
        %434 = vdwg.mxu0
        %vm435 = vcmask 556032
        %v436 = vsel %vm435, %v412, 0.0
        %v437 = vadd.f32 %v371, %v436
        %v438 = vadd.f32 %v437, %v374
        %v439 = vsel %vm435, %v415, 0.0
        %v440 = vadd.f32 %v438, %v439
        %v441 = vadd.f32 %v440, %v377
        %v442 = vsel %vm435, %v418, 0.0
        %v443 = vadd.f32 %v441, %v442
        %v444 = vadd.f32 %v443, %v380
        %v445 = vsel %vm435, %v421, 0.0
        %v446 = vadd.f32 %v444, %v445
        %v447 = vadd.f32 %v446, %v383
        %v448 = vsel %vm435, %v424, 0.0
        %v449 = vadd.f32 %v447, %v448
        %v450 = vadd.f32 %v449, %v386
        %v451 = vsel %vm435, %v427, 0.0
        %v452 = vadd.f32 %v450, %v451
        %v453 = vadd.f32 %v452, %v389
        %v454 = vsel %vm435, %v430, 0.0
        %v455 = vadd.f32 %v453, %v454
        %v456 = vadd.f32 %v455, %v392
        %v457 = vsel %vm435, %v433, 0.0
        %v458 = vadd.f32 %v456, %v457
        %459 = vadd.xlane.f32.xlu0 %v458
        %v460 = vpop.xlane.xlu0 %459
        %v461 = vrot.slane %v460, 4
        %v462 = vadd.f32 %v460, %v461
        %v463 = vrot.slane %v462, 2
        %v464 = vadd.f32 %v462, %v463
        %v465 = vrot.slane %v464, 1
        %v466 = vadd.f32 %v464, %v465
        %s467 = vtos %v466
        %v468 = vmul.f32 %v371, %v371
        %v469 = vmul.f32 %v412, %v412
        %v470 = vmul.f32 %v374, %v374
        %v471 = vmul.f32 %v415, %v415
        %v472 = vmul.f32 %v377, %v377
        %v473 = vmul.f32 %v418, %v418
        %v474 = vmul.f32 %v380, %v380
        %v475 = vmul.f32 %v421, %v421
        %v476 = vmul.f32 %v383, %v383
        %v477 = vmul.f32 %v424, %v424
        %v478 = vmul.f32 %v386, %v386
        %v479 = vmul.f32 %v427, %v427
        %v480 = vmul.f32 %v389, %v389
        %v481 = vmul.f32 %v430, %v430
        %v482 = vmul.f32 %v392, %v392
        %v483 = vmul.f32 %v433, %v433
        %v484 = vsel %vm435, %v469, 0.0
        %v485 = vadd.f32 %v468, %v484
        %v486 = vadd.f32 %v485, %v470
        %v487 = vsel %vm435, %v471, 0.0
        %v488 = vadd.f32 %v486, %v487
        %v489 = vadd.f32 %v488, %v472
        %v490 = vsel %vm435, %v473, 0.0
        %v491 = vadd.f32 %v489, %v490
        %v492 = vadd.f32 %v491, %v474
        %v493 = vsel %vm435, %v475, 0.0
        %v494 = vadd.f32 %v492, %v493
        %v495 = vadd.f32 %v494, %v476
        %v496 = vsel %vm435, %v477, 0.0
        %v497 = vadd.f32 %v495, %v496
        %v498 = vadd.f32 %v497, %v478
        %v499 = vsel %vm435, %v479, 0.0
        %v500 = vadd.f32 %v498, %v499
        %v501 = vadd.f32 %v500, %v480
        %v502 = vsel %vm435, %v481, 0.0
        %v503 = vadd.f32 %v501, %v502
        %v504 = vadd.f32 %v503, %v482
        %v505 = vsel %vm435, %v483, 0.0
        %v506 = vadd.f32 %v504, %v505
        %507 = vadd.xlane.f32.xlu0 %v506
        %v508 = vpop.xlane.xlu0 %507
        %v509 = vrot.slane %v508, 4
        %v510 = vadd.f32 %v508, %v509
        %v511 = vrot.slane %v510, 2
        %v512 = vadd.f32 %v510, %v511
        %v513 = vrot.slane %v512, 1
        %v514 = vadd.f32 %v512, %v513
        %s515 = vtos %v514
        %s516 = smul.f32 %s467, 7.9719386e-05
        %s517 = smul.f32 %s515, 7.9719386e-05
        %s518 = smul.f32 %s516, %s516
        %s519 = ssub.f32 %s517, %s518
        %s520 = sadd.f32 %s519, 1e-05
        %v521 = vstv %s520
        %v522 = vrsqrt.pop %v521
        %v523 = vmul.f32 %v522, %v521
        %v524 = vmul.f32 %v523, %v522
        %v525 = vmul.f32 0.5, %v524
        %v526 = vsub.f32 1.5, %v525
        %v527 = vmul.f32 %v522, %v526
        %vm528 = vweird.f32 %v521
        %vm529 = vweird.f32 %v522
        %vm530 = vmor %vm528, %vm529
        %v531 = vsel %vm530, %v522, %v527
        %s532 = vtos %v531
        %v533 = vstv %s516
        %v534 = vsub.f32 %v371, %v533
        %v535 = vsub.f32 %v412, %v533
        %v536 = vsub.f32 %v374, %v533
        %v537 = vsub.f32 %v415, %v533
        %v538 = vsub.f32 %v377, %v533
        %v539 = vsub.f32 %v418, %v533
        %v540 = vsub.f32 %v380, %v533
        %v541 = vsub.f32 %v421, %v533
        %v542 = vsub.f32 %v383, %v533
        %v543 = vsub.f32 %v424, %v533
        %v544 = vsub.f32 %v386, %v533
        %v545 = vsub.f32 %v427, %v533
        %v546 = vsub.f32 %v389, %v533
        %v547 = vsub.f32 %v430, %v533
        %v548 = vsub.f32 %v392, %v533
        %v549 = vsub.f32 %v433, %v533
        %v550 = vstv %s532
        %v551 = vmul.f32 %v550, %v231
        %v552 = vmul.f32 %v550, %v232
        %v553 = vmul.f32 %v550, %v233
        %v554 = vmul.f32 %v550, %v234
        %v555 = vmul.f32 %v550, %v235
        %v556 = vmul.f32 %v550, %v236
        %v557 = vmul.f32 %v550, %v237
        %v558 = vmul.f32 %v550, %v238
        %v559 = vmul.f32 %v550, %v239
        %v560 = vmul.f32 %v550, %v240
        %v561 = vmul.f32 %v550, %v241
        %v562 = vmul.f32 %v550, %v242
        %v563 = vmul.f32 %v550, %v243
        %v564 = vmul.f32 %v550, %v244
        %v565 = vmul.f32 %v550, %v245
        %v566 = vmul.f32 %v550, %v246
        %v567 = vmul.f32 %v534, %v551
        %v568 = vmul.f32 %v535, %v552
        %v569 = vmul.f32 %v536, %v553
        %v570 = vmul.f32 %v537, %v554
        %v571 = vmul.f32 %v538, %v555
        %v572 = vmul.f32 %v539, %v556
        %v573 = vmul.f32 %v540, %v557
        %v574 = vmul.f32 %v541, %v558
        %v575 = vmul.f32 %v542, %v559
        %v576 = vmul.f32 %v543, %v560
        %v577 = vmul.f32 %v544, %v561
        %v578 = vmul.f32 %v545, %v562
        %v579 = vmul.f32 %v546, %v563
        %v580 = vmul.f32 %v547, %v564
        %v581 = vmul.f32 %v548, %v565
        %v582 = vmul.f32 %v549, %v566
        %v583 = vadd.f32 %v567, %v247
        %v584 = vadd.f32 %v568, %v248
        %v585 = vadd.f32 %v569, %v249
        %v586 = vadd.f32 %v570, %v250
        %v587 = vadd.f32 %v571, %v251
        %v588 = vadd.f32 %v572, %v252
        %v589 = vadd.f32 %v573, %v253
        %v590 = vadd.f32 %v574, %v254
        %v591 = vadd.f32 %v575, %v255
        %v592 = vadd.f32 %v576, %v256
        %v593 = vadd.f32 %v577, %v257
        %v594 = vadd.f32 %v578, %v258
        %v595 = vadd.f32 %v579, %v259
        %v596 = vadd.f32 %v580, %v260
        %v597 = vadd.f32 %v581, %v261
        %v598 = vadd.f32 %v582, %v262
        %599 = vst [vmem:[%s217] sm:$0xff] %v583
        %600 = vst.msk [vmem:[%s217 + $0x8] sm:$0xff] %vm435, %v584
        %601 = vst [vmem:[%s217 + $0x10] sm:$0xff] %v585
        %602 = vst.msk [vmem:[%s217 + $0x18] sm:$0xff] %vm435, %v586
        %603 = vst [vmem:[%s217 + $0x20] sm:$0xff] %v587
        %604 = vst.msk [vmem:[%s217 + $0x28] sm:$0xff] %vm435, %v588
        %605 = vst [vmem:[%s217 + $0x30] sm:$0xff] %v589
        %606 = vst.msk [vmem:[%s217 + $0x38] sm:$0xff] %vm435, %v590
        %607 = vst [vmem:[%s217 + $0x40] sm:$0xff] %v591
        %608 = vst.msk [vmem:[%s217 + $0x48] sm:$0xff] %vm435, %v592
        %609 = vst [vmem:[%s217 + $0x50] sm:$0xff] %v593
        %610 = vst.msk [vmem:[%s217 + $0x58] sm:$0xff] %vm435, %v594
        %611 = vst [vmem:[%s217 + $0x60] sm:$0xff] %v595
        %612 = vst.msk [vmem:[%s217 + $0x68] sm:$0xff] %vm435, %v596
        %613 = vst [vmem:[%s217 + $0x70] sm:$0xff] %v597
        %614 = vst.msk [vmem:[%s217 + $0x78] sm:$0xff] %vm435, %v598
        %s615 = sand.u32 %s137, 1
        %s616 = scalar_lea.sflag [#allocation3], %s615
        %s617 = sand.u32 %s137, 1
        %s618 = smul.addr %s617, 128
        %s619 = scalar_lea.vmem [#allocation2], %s618
        // Predicated region
        $region41: #{tpu_custom_call.1} parent=39 // pred_check
          %p620 = pneg %p147
        $region42: #{tpu_custom_call.1} parent=39 // pred_check_branch
          %622 = sbr.rel (%p620) target = $region44
        $region43: #{tpu_custom_call.1} parent=39 // pred_region
          %624 = vsyncadd %s616, 0
          %s625 = smul.addr %s19, 16
          %s626 = smul.addr %s625, 8
          %s627 = scalar_lea.hbm %s5, %s626
          %s628 = sshll.u32 %s619, 4
          %s629 = int_to_ptr.vmem [resolvable:$true] %s628
          %s630 = sshll.u32 %s627, 4
          %s631 = int_to_ptr.hbm [resolvable:$true] %s630
          %636 = dma.vmem_to_hbm [thread:$0]  %s629, 2048, %s631, %s616, 256, 256, 16
        $region44: #{tpu_custom_call.1} parent=39 // pred_fallthru
          _
      $region40: #{tpu_custom_call.1} parent=5 // pred_fallthru
        _
      %p637 = scmp.le.s32.totalorder 2, %s14
      // Predicated region
      $region45: #{tpu_custom_call.1} parent=5 // pred_check
        %p638 = pneg %p637
      $region46: #{tpu_custom_call.1} parent=5 // pred_check_branch
        %640 = sbr.rel (%p638) target = $region48
      $region47: #{tpu_custom_call.1} parent=5 // pred_region
        %s641 = ssub.s32 %s14, 2
        // Predicated region
        $region49: #{tpu_custom_call.1} parent=47 // pred_check
          %p642 = pneg %p153
        $region50: #{tpu_custom_call.1} parent=47 // pred_check_branch
          %644 = sbr.rel (%p642) target = $region52
        $region51: #{tpu_custom_call.1} parent=47 // pred_region
          %s645 = sand.u32 %s138, 1
          %s646 = scalar_lea.sflag [#allocation3], %s645
          %s647 = sand.u32 %s138, 1
          %s648 = smul.addr %s647, 128
          %s649 = scalar_lea.vmem [#allocation2], %s648
          %651 = dma.done %s646, 2048
        $region52: #{tpu_custom_call.1} parent=47 // pred_fallthru
          _
      $region48: #{tpu_custom_call.1} parent=5 // pred_fallthru
        _
    $region6: #{tpu_custom_call.1} parent=1 // loop_footer
      %s18 = sadd.s32 1, %s14
    $region7: #{tpu_custom_call.1} parent=1 // loop_footer_branch
      %13 = sbr.rel target = $region3
    $region8: #{tpu_custom_call.1} parent=1 // loop_exit
      _
    %652 = vsyncpa [#allocation3], 1
    %s653 = scalar_lea.sflag [#allocation3], 1
    %654 = vsyncpa %s653, 1

</llo_original>
